<compile_context>
chip_gen: v7x
topology: tpu7x:2x2x1
jax: 0.10.0
libtpu: 0.0.40
codegen_flags: <defaults>
</compile_context>

<pallas_src>
import functools

import jax
import jax.numpy as jnp
from jax.experimental import pallas as pl
from jax.experimental.pallas import tpu as pltpu


def _scores(x, w_ref, b_ref, precision):
    """scores[b, 0, s] = sum_h w[h] * x[b, s, h] + bias   (MXU, f32 accumulate)."""
    tb, _, h = x.shape
    wv = jnp.broadcast_to(w_ref[...], (tb, 1, h))          # (TB, 1, H), same dtype as x
    bias = b_ref[0, 0]                                     # scalar bias from SMEM
    return jnp.einsum("bqh,bsh->bqs", wv, x,
                      preferred_element_type=jnp.float32,
                      precision=precision) + bias


def _pool(weights, x, precision):
    """pooled[b, 0, h] = sum_s weights[b, 0, s] * x[b, s, h]   (MXU, f32 accumulate)."""
    return jnp.einsum("bqs,bsh->bqh", weights.astype(x.dtype), x,
                      preferred_element_type=jnp.float32,
                      precision=precision)


def _adaptive_pooler_kernel(x_ref, w_ref, b_ref, weights_ref, out_ref, *, precision):
    x = x_ref[...]                                         # (TB, S, H), native dtype
    scores = _scores(x, w_ref, b_ref, precision)           # (TB, 1, S) f32
    m = jnp.max(scores, axis=-1, keepdims=True)
    e = jnp.exp(scores - m)
    weights = e * pl.reciprocal(jnp.sum(e, axis=-1, keepdims=True), approx=True)
    weights_ref[...] = weights.astype(weights_ref.dtype)
    out_ref[...] = _pool(weights, x, precision).astype(out_ref.dtype)


def _adaptive_pooler_mask_kernel(x_ref, w_ref, b_ref, mask_ref, weights_ref, out_ref, *,
                                 precision):
    x = x_ref[...]                                         # (TB, S, H), native dtype
    scores = _scores(x, w_ref, b_ref, precision)           # (TB, 1, S) f32
    m = jnp.max(scores, axis=-1, keepdims=True)
    # Fused softmax * mask renormalization: the softmax denominator cancels, so
    # softmax(s)*mask / sum(softmax(s)*mask) == exp(s-max)*mask / sum(exp(s-max)*mask).
    # NOTE: an all-zero mask row divides by ~0 -> NaN, matching the PyTorch reference behavior.
    e = jnp.exp(scores - m) * mask_ref[...]                # mask block is (TB, 1, S) f32
    weights = e * pl.reciprocal(jnp.sum(e, axis=-1, keepdims=True), approx=True)
    weights_ref[...] = weights.astype(weights_ref.dtype)
    out_ref[...] = _pool(weights, x, precision).astype(out_ref.dtype)


def _choose_batch_tile(B, S, H, itemsize, budget_bytes):
    """Largest TB whose double-buffered x tile fits the VMEM budget, with >= 2 grid steps."""
    per_row = 2 * S * H * itemsize          # double-buffered x rows dominate the footprint
    tb = max(1, budget_bytes // max(per_row, 1))
    tb = int(min(B, tb))
    if B >= 2:
        # At least two grid steps: overlaps DMA with compute and lets v7x shard the
        # "parallel" batch axis across its two TensorCores.
        tb = min(tb, (B + 1) // 2)
    return max(1, tb)


def adaptive_pooler(inputs, w, b, mask=None, *, vmem_tile_budget_bytes=16 * 1024 * 1024):
    """inputs: (B, S, H) float dtype; w: (H,); b: scalar; mask: optional (B, S).

    Returns (weights (B, S) f32, pooled (B, H) in inputs.dtype)."""
    B, S, H = inputs.shape
    itemsize = jnp.dtype(inputs.dtype).itemsize
    tb = _choose_batch_tile(B, S, H, itemsize, vmem_tile_budget_bytes)
    grid = (pl.cdiv(B, tb),)

    # Multi-pass (HIGHEST) precision only pays off for f32 operands; bf16/f16 run native 1-pass.
    precision = (jax.lax.Precision.HIGHEST
                 if jnp.dtype(inputs.dtype) == jnp.float32
                 else jax.lax.Precision.DEFAULT)

    w2 = jnp.asarray(w).reshape(1, H).astype(inputs.dtype)    # tiny; dtype matched to x for the MXU
    b2 = jnp.asarray(b, jnp.float32).reshape(1, 1)            # scalar -> SMEM

    x_spec = pl.BlockSpec((tb, S, H), lambda i: (i, 0, 0))
    w_spec = pl.BlockSpec(memory_space=pltpu.MemorySpace.VMEM)   # whole (1, H), grid-invariant
    b_spec = pl.BlockSpec(memory_space=pltpu.MemorySpace.SMEM)   # whole (1, 1) scalar
    weights_spec = pl.BlockSpec((tb, 1, S), lambda i: (i, 0, 0))
    out_spec = pl.BlockSpec((tb, 1, H), lambda i: (i, 0, 0))

    out_shape = (
        jax.ShapeDtypeStruct((B, 1, S), jnp.float32),    # weights (squeezed in the wrapper)
        jax.ShapeDtypeStruct((B, 1, H), inputs.dtype),   # pooled outputs
    )
    compiler_params = pltpu.CompilerParams(
        dimension_semantics=("parallel",),               # shards the batch grid across v7x's 2 TCs
        vmem_limit_bytes=32 * 1024 * 1024,               # safe on v5e/v6e/v7x; >= tile budget
    )

    if mask is None:
        grid_spec = pltpu.PrefetchScalarGridSpec(
            num_scalar_prefetch=0, grid=grid,
            in_specs=[x_spec, w_spec, b_spec],
            out_specs=(weights_spec, out_spec))
        weights3, out3 = pl.pallas_call(
            functools.partial(_adaptive_pooler_kernel, precision=precision),
            out_shape=out_shape,
            grid_spec=grid_spec,
            compiler_params=compiler_params,
        )(inputs, w2, b2)
    else:
        mask3 = jnp.asarray(mask, jnp.float32).reshape(B, 1, S)   # tiny relative to x traffic
        mask_spec = pl.BlockSpec((tb, 1, S), lambda i: (i, 0, 0))
        grid_spec = pltpu.PrefetchScalarGridSpec(
            num_scalar_prefetch=0, grid=grid,
            in_specs=[x_spec, w_spec, b_spec, mask_spec],
            out_specs=(weights_spec, out_spec))
        weights3, out3 = pl.pallas_call(
            functools.partial(_adaptive_pooler_mask_kernel, precision=precision),
            out_shape=out_shape,
            grid_spec=grid_spec,
            compiler_params=compiler_params,
        )(inputs, w2, b2, mask3)

    # (B,1,S)->(B,S) and (B,1,H)->(B,H) are free reshapes outside the kernel.
    return weights3.reshape(B, S), out3.reshape(B, H)


def adaptive_pooler_ref(inputs, w, b, mask=None):
    """Pure-JAX reference mirroring the PyTorch forward (f32 math)."""
    xf = inputs.astype(jnp.float32)
    scores = jnp.squeeze(xf @ w.reshape(-1, 1).astype(jnp.float32) + b, axis=-1)  # (B, S)
    weights = jax.nn.softmax(scores, axis=-1)
    if mask is not None:
        weights = weights * mask
        weights = weights / weights.sum(axis=-1, keepdims=True)
    # (inputs.permute(2,0,1) * weights).sum(-1).T
    outputs = jnp.sum(jnp.transpose(xf, (2, 0, 1)) * weights, axis=-1).T
    return weights, outputs


if __name__ == "__main__":
    B, S, H = 2, 8, 32
    key = jax.random.PRNGKey(0)
    kx, kw, kb = jax.random.split(key, 3)

    inputs = jax.random.normal(kx, (B, S, H), dtype=jnp.float32)
    # deterministic "Linear(H, 1)" parameters
    w = jax.random.normal(kw, (H,), dtype=jnp.float32) * 0.1
    b = jax.random.normal(kb, (), dtype=jnp.float32) * 0.1

    # --- no-mask path ---
    weights_k, out_k = adaptive_pooler(inputs, w, b)
    jax.block_until_ready((weights_k, out_k))
    weights_r, out_r = adaptive_pooler_ref(inputs, w, b)
    assert weights_k.shape == (B, S) and out_k.shape == (B, H)
    # approx reciprocal (EUP) introduces ~1e-4 relative error; tolerances account for it.
    assert jnp.allclose(weights_k, weights_r, atol=2e-3, rtol=2e-3)
    assert jnp.allclose(out_k, out_r, atol=2e-3, rtol=2e-3)

    # --- masked path (valid lengths 8 and 5) ---
    lengths = jnp.array([8, 5])
    mask = (jnp.arange(S)[None, :] < lengths[:, None]).astype(jnp.float32)
    weights_km, out_km = adaptive_pooler(inputs, w, b, mask)
    jax.block_until_ready((weights_km, out_km))
    weights_rm, out_rm = adaptive_pooler_ref(inputs, w, b, mask)
    assert jnp.allclose(weights_km, weights_rm, atol=2e-3, rtol=2e-3)
    assert jnp.allclose(out_km, out_rm, atol=2e-3, rtol=2e-3)

    print("KERNEL_OK")
</pallas_src>

<mosaic_0001>
module attributes {stable_mosaic.version = 11 : i64} {
  func.func @_adaptive_pooler_kernel(%arg0: i32, %arg1: memref<1x8x32xf32, #tpu.memory_space<vmem>>, %arg2: memref<1x32xf32, #tpu.memory_space<vmem>>, %arg3: memref<1x1xf32, #tpu.memory_space<smem>>, %arg4: memref<1x1x8xf32, #tpu.memory_space<vmem>>, %arg5: memref<1x1x32xf32, #tpu.memory_space<vmem>>) attributes {dimension_semantics = [#tpu.dimension_semantics<parallel>], iteration_bounds = array<i64: 2>, scalar_prefetch = 0 : i64, scratch_operands = 0 : i64, tpu.core_type = #tpu.core_type<tc>, window_params = [{transform_indices = @transform_0, window_bounds = array<i64: 1, 8, 32>}, {pipeline_mode = #tpu.pipeline_mode<synchronous>, transform_indices = @transform_1, window_bounds = array<i64: 1, 32>}, {transform_indices = @transform_2, window_bounds = array<i64: 1, 1>}, {transform_indices = @transform_3, window_bounds = array<i64: 1, 1, 8>}, {transform_indices = @transform_4, window_bounds = array<i64: 1, 1, 32>}]} {
    %c0 = arith.constant 0 : index
    %c0_0 = arith.constant 0 : index
    %c0_1 = arith.constant 0 : index
    %0 = vector.load %arg1[%c0, %c0_0, %c0_1] : memref<1x8x32xf32, #tpu.memory_space<vmem>>, vector<1x8x32xf32>
    %c0_2 = arith.constant 0 : index
    %c0_3 = arith.constant 0 : index
    %1 = vector.load %arg2[%c0_2, %c0_3] : memref<1x32xf32, #tpu.memory_space<vmem>>, vector<1x32xf32>
    %2 = vector.shape_cast %1 : vector<1x32xf32> to vector<1x1x32xf32>
    %c0_4 = arith.constant 0 : index
    %c0_5 = arith.constant 0 : index
    %3 = memref.load %arg3[%c0_4, %c0_5] : memref<1x1xf32, #tpu.memory_space<smem>>
    "tpu.trace_start"() <{level = 10 : i32, message = "bqh,bsh->bqs"}> : () -> ()
    %cst = arith.constant dense<0.000000e+00> : vector<1x1x8xf32>
    %4 = tpu.matmul %2, %0, %cst {dimension_numbers = #tpu.dot_dimension_numbers<[2], [2], [1], [1], [0, 0, 0, 1, 1, 1], [0], [0]>, precision = #tpu.contract_precision<fp32>} : vector<1x1x32xf32>, vector<1x8x32xf32>, vector<1x1x8xf32> -> vector<1x1x8xf32>
    "tpu.trace_stop"() : () -> ()
    %5 = vector.broadcast %3 : f32 to vector<1x1x8xf32>
    %6 = arith.addf %4, %5 : vector<1x1x8xf32>
    %cst_6 = arith.constant dense<0xFF800000> : vector<1x1xf32>
    %7 = vector.multi_reduction <maximumf>, %6, %cst_6 [2] : vector<1x1x8xf32> to vector<1x1xf32>
    %8 = vector.shape_cast %7 : vector<1x1xf32> to vector<1x1x1xf32>
    %9 = vector.broadcast %8 : vector<1x1x1xf32> to vector<1x1x8xf32>
    %10 = arith.subf %6, %9 : vector<1x1x8xf32>
    %11 = math.exp %10 : vector<1x1x8xf32>
    %cst_7 = arith.constant dense<0.000000e+00> : vector<1x1xf32>
    %12 = vector.multi_reduction <add>, %11, %cst_7 [2] : vector<1x1x8xf32> to vector<1x1xf32>
    %13 = vector.shape_cast %12 : vector<1x1xf32> to vector<1x1x1xf32>
    %14 = tpu.reciprocal %13 {approx = true} : vector<1x1x1xf32> -> vector<1x1x1xf32>
    %15 = vector.broadcast %14 : vector<1x1x1xf32> to vector<1x1x8xf32>
    %16 = arith.mulf %11, %15 : vector<1x1x8xf32>
    %c0_8 = arith.constant 0 : index
    %c0_9 = arith.constant 0 : index
    %c0_10 = arith.constant 0 : index
    %17 = vector.load %arg4[%c0_8, %c0_9, %c0_10] : memref<1x1x8xf32, #tpu.memory_space<vmem>>, vector<1x1x8xf32>
    tpu.vector_store %arg4[%c0_8, %c0_9, %c0_10], %16 {strides = array<i32>} : memref<1x1x8xf32, #tpu.memory_space<vmem>>, vector<1x1x8xf32>,
    "tpu.trace_start"() <{level = 10 : i32, message = "bqs,bsh->bqh"}> : () -> ()
    %cst_11 = arith.constant dense<0.000000e+00> : vector<1x1x32xf32>
    %18 = tpu.matmul %16, %0, %cst_11 {dimension_numbers = #tpu.dot_dimension_numbers<[2], [1], [1], [2], [0, 0, 0, 1, 1, 2], [0], [0]>, precision = #tpu.contract_precision<fp32>} : vector<1x1x8xf32>, vector<1x8x32xf32>, vector<1x1x32xf32> -> vector<1x1x32xf32>
    "tpu.trace_stop"() : () -> ()
    %c0_12 = arith.constant 0 : index
    %c0_13 = arith.constant 0 : index
    %c0_14 = arith.constant 0 : index
    %19 = vector.load %arg5[%c0_12, %c0_13, %c0_14] : memref<1x1x32xf32, #tpu.memory_space<vmem>>, vector<1x1x32xf32>
    tpu.vector_store %arg5[%c0_12, %c0_13, %c0_14], %18 {strides = array<i32>} : memref<1x1x32xf32, #tpu.memory_space<vmem>>, vector<1x1x32xf32>,
    return
  }
  func.func @transform_0(%arg0: i32) -> (i32, i32, i32) {
    %c0_i32 = arith.constant 0 : i32
    %c0_i32_0 = arith.constant 0 : i32
    %c0_i32_1 = arith.constant 0 : i32
    return %arg0, %c0_i32, %c0_i32_0 : i32, i32, i32
  }
  func.func @transform_1(%arg0: i32) -> (i32, i32) {
    %c0_i32 = arith.constant 0 : i32
    %c0_i32_0 = arith.constant 0 : i32
    %c0_i32_1 = arith.constant 0 : i32
    return %c0_i32, %c0_i32_0 : i32, i32
  }
  func.func @transform_2(%arg0: i32) -> (i32, i32) {
    %c0_i32 = arith.constant 0 : i32
    %c0_i32_0 = arith.constant 0 : i32
    %c0_i32_1 = arith.constant 0 : i32
    return %c0_i32, %c0_i32_0 : i32, i32
  }
  func.func @transform_3(%arg0: i32) -> (i32, i32, i32) {
    %c0_i32 = arith.constant 0 : i32
    %c0_i32_0 = arith.constant 0 : i32
    %c0_i32_1 = arith.constant 0 : i32
    return %arg0, %c0_i32, %c0_i32_0 : i32, i32, i32
  }
  func.func @transform_4(%arg0: i32) -> (i32, i32, i32) {
    %c0_i32 = arith.constant 0 : i32
    %c0_i32_0 = arith.constant 0 : i32
    %c0_i32_1 = arith.constant 0 : i32
    return %arg0, %c0_i32, %c0_i32_0 : i32, i32, i32
  }
}

</mosaic_0001>

<llo_original>
// kernel: tpu_custom_call.1
$region0: #{tpu_custom_call.1}
  #allocation0 [shape = 'u32[]', space=smem, size = 0x4, offset = 0x4, fixed_abs, tag = 'smem constant byte address 0x4 - core index']
  #allocation1 [shape = 'u32[144,128]{1,0:T(1,128)}', space=vmem, size = 0x12000, scoped, tag = 'internal scratch']
  #allocation2 [shape = 'f32[1,1]{1,0:T(1,128)S(6)}', space=smem, size = 0x200, scoped, tag = 'scoped memory for tpu_custom_call.1']
  %s0 = inlined_call_operand.hbm [shape: f32[2,8,32], index: 0, kind: input, shape index: {}]
  %s1 = inlined_call_operand.vmem [shape: f32[1,32], index: 1, kind: input, shape index: {}]
  %s2 = inlined_call_operand.<no memory space> [shape: f32[1,1], index: 2, kind: input, shape index: {}]
  %s3 = inlined_call_operand.hbm [shape: f32[2,1,8], index: 3, kind: output, shape index: {0}]
  %s4 = inlined_call_operand.hbm [shape: f32[2,1,32], index: 4, kind: output, shape index: {1}]
  %5 = xla_tuple %s3, %s4
  %s6 = sld [smem:[#allocation0]]
  $region57: #{tpu_custom_call.1} parent=0
    _
  %s8 = ssub.s32 1, %s6
  %s9 = scalar_select 0, %s8, %s6
  %10 = sst [smem:[#allocation2]] %s2
  $region1: #{tpu_custom_call.1} parent=0
    #allocation3 [shape = 'u8[8192]{0}', space=vmem, size = 0x2000, scoped, tag = 'input window, operand 0']
    #allocation4 [shape = 's32[2]{0}', space=sflag, size = 0x8, scoped, tag = 'scoped memory for tpu_custom_call.1']
    #allocation5 [shape = 's32[2]{0}', space=sflag, size = 0x8, scoped, tag = 'scoped memory for tpu_custom_call.1']
    #allocation6 [shape = 'u8[1024]{0}', space=vmem, size = 0x400, scoped, tag = 'output window, operand 0']
    #allocation7 [shape = 'u8[1024]{0}', space=vmem, size = 0x400, scoped, tag = 'output window, operand 1']
    #allocation8 [shape = 's32[2]{0}', space=sflag, size = 0x8, scoped, tag = 'scoped memory for tpu_custom_call.1']
    %11 = vsyncpa [#allocation4], 0
    %s12 = scalar_lea.sflag [#allocation4], 1
    %13 = vsyncpa %s12, 0
    %14 = vsyncpa [#allocation5], 0
    %s15 = scalar_lea.sflag [#allocation5], 1
    %16 = vsyncpa %s15, 0
    %17 = vsyncpa [#allocation8], 0
    %s18 = scalar_lea.sflag [#allocation8], 1
    %19 = vsyncpa %s18, 0
    loop: start=0, step=1, limit=4
    $region2: #{tpu_custom_call.1} parent=1 // loop_pre_header
      _
    $region3: #{tpu_custom_call.1} parent=1 // loop_header
      %s21 = sphi 0, %s25
      %p22 = scmp.ge.s32.totalorder %s21, 4
      %s31 = sphi 0, %s33
      %s34 = sphi 0, %s31
      %s35 = sphi 0, %s34
      %s51 = sphi 0, %s35
      %s55 = sphi 0, %s55
      %s57 = sphi 0, %s55
      %s58 = sphi 0, %s57
      %s72 = sphi 0, %s58
      %s76 = sphi 0, %s76
      %s78 = sphi 0, %s76
      %s79 = sphi 0, %s78
      %s93 = sphi 0, %s79
      %s99 = sphi 0, %s101
      %s102 = sphi 0, %s99
      %s103 = sphi 0, %s102
      %s119 = sphi 0, %s103
      %s125 = sphi 0, %s127
      %s128 = sphi 0, %s125
      %s129 = sphi 0, %s128
      %s145 = sphi 0, %s129
    $region4: #{tpu_custom_call.1} parent=1 // loop_header_branch
      %24 = sbr.rel (%p22) target = $region8
    $region5: #{tpu_custom_call.1} parent=1 // loop_body
      %s26 = ssub.s32 %s21, 1
      %s27 = ssub.s32 %s21, 2
      %s28 = sadd.s32 %s21, 1
      %s29 = ssub.s32 %s21, %s28
      %p30 = scmp.eq.s32.totalorder %s29, 0
      %s32 = sadd.s32 %s31, 1
      %s33 = scalar_select %p30, %s31, %s32
      %p36 = pneg %p30
      %p37 = scmp.eq.s32.totalorder %s21, 1
      %p38 = por %p36, %p37
      %p39 = scmp.ne.s32.totalorder %s31, %s34
      %p40 = scmp.eq.s32.totalorder %s21, 0
      %p41 = por %p39, %p40
      %p42 = scmp.ne.s32.totalorder %s31, %s34
      %p43 = scmp.eq.s32.totalorder %s26, 1
      %p44 = por %p42, %p43
      %p45 = scmp.ne.s32.totalorder %s34, %s35
      %p46 = scmp.eq.s32.totalorder %s26, 0
      %p47 = por %p45, %p46
      %p48 = scmp.ne.s32.totalorder %s34, %s35
      %p49 = scmp.eq.s32.totalorder %s27, 1
      %p50 = por %p48, %p49
      %p52 = scmp.ne.s32.totalorder %s35, %s51
      %p53 = scmp.eq.s32.totalorder %s27, 0
      %p54 = por %p52, %p53
      %s56 = sadd.s32 %s55, 1
      %p59 = scmp.eq.s32.totalorder %s21, 1
      %p60 = scmp.ne.s32.totalorder %s55, %s57
      %p61 = scmp.eq.s32.totalorder %s21, 0
      %p62 = por %p60, %p61
      %p63 = scmp.ne.s32.totalorder %s55, %s57
      %p64 = scmp.eq.s32.totalorder %s26, 1
      %p65 = por %p63, %p64
      %p66 = scmp.ne.s32.totalorder %s57, %s58
      %p67 = scmp.eq.s32.totalorder %s26, 0
      %p68 = por %p66, %p67
      %p69 = scmp.ne.s32.totalorder %s57, %s58
      %p70 = scmp.eq.s32.totalorder %s27, 1
      %p71 = por %p69, %p70
      %p73 = scmp.ne.s32.totalorder %s58, %s72
      %p74 = scmp.eq.s32.totalorder %s27, 0
      %p75 = por %p73, %p74
      %s77 = sadd.s32 %s76, 1
      %p80 = scmp.eq.s32.totalorder %s21, 1
      %p81 = scmp.ne.s32.totalorder %s76, %s78
      %p82 = scmp.eq.s32.totalorder %s21, 0
      %p83 = por %p81, %p82
      %p84 = scmp.ne.s32.totalorder %s76, %s78
      %p85 = scmp.eq.s32.totalorder %s26, 1
      %p86 = por %p84, %p85
      %p87 = scmp.ne.s32.totalorder %s78, %s79
      %p88 = scmp.eq.s32.totalorder %s26, 0
      %p89 = por %p87, %p88
      %p90 = scmp.ne.s32.totalorder %s78, %s79
      %p91 = scmp.eq.s32.totalorder %s27, 1
      %p92 = por %p90, %p91
      %p94 = scmp.ne.s32.totalorder %s79, %s93
      %p95 = scmp.eq.s32.totalorder %s27, 0
      %p96 = por %p94, %p95
      %s97 = ssub.s32 %s21, %s28
      %p98 = scmp.eq.s32.totalorder %s97, 0
      %s100 = sadd.s32 %s99, 1
      %s101 = scalar_select %p98, %s99, %s100
      %p104 = pneg %p98
      %p105 = scmp.eq.s32.totalorder %s21, 1
      %p106 = por %p104, %p105
      %p107 = scmp.ne.s32.totalorder %s99, %s102
      %p108 = scmp.eq.s32.totalorder %s21, 0
      %p109 = por %p107, %p108
      %p110 = scmp.ne.s32.totalorder %s99, %s102
      %p111 = scmp.eq.s32.totalorder %s26, 1
      %p112 = por %p110, %p111
      %p113 = scmp.ne.s32.totalorder %s102, %s103
      %p114 = scmp.eq.s32.totalorder %s26, 0
      %p115 = por %p113, %p114
      %p116 = scmp.ne.s32.totalorder %s102, %s103
      %p117 = scmp.eq.s32.totalorder %s27, 1
      %p118 = por %p116, %p117
      %p120 = scmp.ne.s32.totalorder %s103, %s119
      %p121 = scmp.eq.s32.totalorder %s27, 0
      %p122 = por %p120, %p121
      %s123 = ssub.s32 %s21, %s28
      %p124 = scmp.eq.s32.totalorder %s123, 0
      %s126 = sadd.s32 %s125, 1
      %s127 = scalar_select %p124, %s125, %s126
      %p130 = pneg %p124
      %p131 = scmp.eq.s32.totalorder %s21, 1
      %p132 = por %p130, %p131
      %p133 = scmp.ne.s32.totalorder %s125, %s128
      %p134 = scmp.eq.s32.totalorder %s21, 0
      %p135 = por %p133, %p134
      %p136 = scmp.ne.s32.totalorder %s125, %s128
      %p137 = scmp.eq.s32.totalorder %s26, 1
      %p138 = por %p136, %p137
      %p139 = scmp.ne.s32.totalorder %s128, %s129
      %p140 = scmp.eq.s32.totalorder %s26, 0
      %p141 = por %p139, %p140
      %p142 = scmp.ne.s32.totalorder %s128, %s129
      %p143 = scmp.eq.s32.totalorder %s27, 1
      %p144 = por %p142, %p143
      %p146 = scmp.ne.s32.totalorder %s129, %s145
      %p147 = scmp.eq.s32.totalorder %s27, 0
      %p148 = por %p146, %p147
      %p149 = scmp.le.s32.totalorder 1, %s21
      %p150 = scmp.lt.s32.totalorder %s21, 3
      %p151 = pnand %p149, %p150
      %p152 = pneg %p151
      // Predicated region
      $region9: #{tpu_custom_call.1} parent=5 // pred_check
        _
      $region10: #{tpu_custom_call.1} parent=5 // pred_check_branch
        %154 = sbr.rel (%p151) target = $region12
      $region11: #{tpu_custom_call.1} parent=5 // pred_region
        %s155 = ssub.s32 %s21, 1
        // Predicated region
        $region13: #{tpu_custom_call.1} parent=11 // pred_check
          %p156 = pneg %p68
        $region14: #{tpu_custom_call.1} parent=11 // pred_check_branch
          %158 = sbr.rel (%p156) target = $region16
        $region15: #{tpu_custom_call.1} parent=11 // pred_region
          _
        $region16: #{tpu_custom_call.1} parent=11 // pred_fallthru
          _
        // Predicated region
        $region17: #{tpu_custom_call.1} parent=11 // pred_check
          %p159 = pneg %p89
        $region18: #{tpu_custom_call.1} parent=11 // pred_check_branch
          %161 = sbr.rel (%p159) target = $region20
        $region19: #{tpu_custom_call.1} parent=11 // pred_region
          _
        $region20: #{tpu_custom_call.1} parent=11 // pred_fallthru
          _
      $region12: #{tpu_custom_call.1} parent=5 // pred_fallthru
        _
      %p162 = scmp.lt.s32.totalorder %s21, 2
      // Predicated region
      $region21: #{tpu_custom_call.1} parent=5 // pred_check
        %p163 = pneg %p162
      $region22: #{tpu_custom_call.1} parent=5 // pred_check_branch
        %165 = sbr.rel (%p163) target = $region24
      $region23: #{tpu_custom_call.1} parent=5 // pred_region
        // Predicated region
        $region25: #{tpu_custom_call.1} parent=23 // pred_check
          %p166 = pneg %p41
        $region26: #{tpu_custom_call.1} parent=23 // pred_check_branch
          %168 = sbr.rel (%p166) target = $region28
        $region27: #{tpu_custom_call.1} parent=23 // pred_region
          %s169 = sand.u32 %s31, 1
          %s170 = scalar_lea.sflag [#allocation4], %s169
          %s171 = sand.u32 %s31, 1
          %s172 = smul.addr %s171, 8
          %s173 = scalar_lea.vmem [#allocation3], %s172
          %s175 = ssub.s32 128, 128
          %176 = vsyncadd %s170, %s175
          %s177 = smul.addr %s21, 128
          %s178 = scalar_lea.hbm %s0, %s177
          %s180 = sshll.u32 %s173, 4
          %s181 = int_to_ptr.vmem [resolvable:$true] %s180
          %183 = dma.hbm_to_vmem [thread:$0]  %s178, 128, %s181, %s170
        $region28: #{tpu_custom_call.1} parent=23 // pred_fallthru
          _
      $region24: #{tpu_custom_call.1} parent=5 // pred_fallthru
        _
      %p184 = scmp.le.s32.totalorder 1, %s21
      %p185 = scmp.lt.s32.totalorder %s21, 3
      %p186 = pnand %p184, %p185
      %p187 = pneg %p186
      // Predicated region
      $region29: #{tpu_custom_call.1} parent=5 // pred_check
        _
      $region30: #{tpu_custom_call.1} parent=5 // pred_check_branch
        %189 = sbr.rel (%p186) target = $region32
      $region31: #{tpu_custom_call.1} parent=5 // pred_region
        %s190 = ssub.s32 %s21, 1
        %s191 = sand.u32 %s34, 1
        %s192 = scalar_lea.sflag [#allocation4], %s191
        %s193 = sand.u32 %s34, 1
        %s194 = smul.addr %s193, 8
        %s195 = scalar_lea.vmem [#allocation3], %s194
        // Predicated region
        $region33: #{tpu_custom_call.1} parent=31 // pred_check
          %p196 = pneg %p47
        $region34: #{tpu_custom_call.1} parent=31 // pred_check_branch
          %198 = sbr.rel (%p196) target = $region36
        $region35: #{tpu_custom_call.1} parent=31 // pred_region
          %199 = dma.done %s192, 128
        $region36: #{tpu_custom_call.1} parent=31 // pred_fallthru
          _
        %s200 = sand.u32 %s34, 1
        %s201 = scalar_lea.sflag [#allocation4], %s200
        %s202 = sand.u32 %s34, 1
        %s203 = smul.addr %s202, 8
        %s204 = scalar_lea.vmem [#allocation3], %s203
        %p205 = pneg %p47
        %p206 = pneg %p44
        %p207 = pneg %p68
        %p208 = pneg %p65
        %p209 = pneg %p89
        %p210 = pneg %p86
        %p211 = pneg %p115
        %p212 = pneg %p112
        %s213 = sand.u32 %s102, 1
        %s214 = scalar_lea.sflag [#allocation5], %s213
        %s215 = sand.u32 %s102, 1
        %s216 = scalar_lea.vmem [#allocation6], %s215
        %p217 = pneg %p141
        %p218 = pneg %p138
        %s219 = sand.u32 %s128, 1
        %s220 = scalar_lea.sflag [#allocation8], %s219
        %s221 = sand.u32 %s128, 1
        %s222 = scalar_lea.vmem [#allocation7], %s221
        %v223 = vld [vmem:[%s195] sm:$0xff]
        %v224 = vld [vmem:[%s1] sm:$0x1]
        %s225 = sld [smem:[#allocation2]]
        %v226 = vstv %s225
        %vm227 = vcmask 261120
        %v229 = vsel %vm227, %v224, 0
        %v232 = vsel %vm227, %v223, 0
        %234 = vmatprep.subr.mxu0 0.0
        %v235 = vand.u32 %v232, 4294901760
        %236 = vmatpush1.xpose.msra.mxu0 %v235
        %237 = vmatprep.subr.mxu0 0.0
        %238 = vmatpush1.xpose.msra.mxu0 0.0
        %239 = vmatprep.subr.mxu0 0.0
        %240 = vmatpush1.xpose.msra.mxu0 0.0
        %241 = vmatprep.subr.mxu0 0.0
        %242 = vmatpush1.xpose.msra.mxu0 0.0
        %243 = vmatprep.subr.mxu0 0.0
        %244 = vmatpush1.xpose.msra.mxu0 0.0
        %245 = vmatprep.subr.mxu0 0.0
        %246 = vmatpush1.xpose.msra.mxu0 0.0
        %247 = vmatprep.subr.mxu0 0.0
        %248 = vmatpush1.xpose.msra.mxu0 0.0
        %249 = vmatprep.subr.mxu0 0.0
        %250 = vmatpush1.xpose.msra.mxu0 0.0
        %251 = vmatprep.subr.mxu0 0.0
        %252 = vmatpush1.xpose.msra.mxu0 0.0
        %253 = vmatprep.subr.mxu0 0.0
        %254 = vmatpush1.xpose.msra.mxu0 0.0
        %255 = vmatprep.subr.mxu0 0.0
        %256 = vmatpush1.xpose.msra.mxu0 0.0
        %257 = vmatprep.subr.mxu0 0.0
        %258 = vmatpush1.xpose.msra.mxu0 0.0
        %259 = vmatprep.subr.mxu0 0.0
        %260 = vmatpush1.xpose.msra.mxu0 0.0
        %261 = vmatprep.subr.mxu0 0.0
        %262 = vmatpush1.xpose.msra.mxu0 0.0
        %263 = vmatprep.subr.mxu0 0.0
        %264 = vmatpush1.xpose.msra.mxu0 0.0
        %265 = vmatprep.subr.mxu0 0.0
        %266 = vmatpush1.xpose.msra.mxu0 0.0
        %267 = vmatprep.subr.mxu0 0.0
        %268 = vmatpush1.xpose.msra.mxu0 0.0
        %269 = vmatprep.subr.mxu0 0.0
        %270 = vmatpush1.xpose.msra.mxu0 0.0
        %271 = vmatprep.subr.mxu0 0.0
        %272 = vmatpush1.xpose.msra.mxu0 0.0
        %273 = vmatprep.subr.mxu0 0.0
        %274 = vmatpush1.xpose.msra.mxu0 0.0
        %275 = vmatprep.subr.mxu0 0.0
        %276 = vmatpush1.xpose.msra.mxu0 0.0
        %277 = vmatprep.subr.mxu0 0.0
        %278 = vmatpush1.xpose.msra.mxu0 0.0
        %279 = vmatprep.subr.mxu0 0.0
        %280 = vmatpush1.xpose.msra.mxu0 0.0
        %281 = vmatprep.subr.mxu0 0.0
        %282 = vmatpush1.xpose.msra.mxu0 0.0
        %283 = vmatprep.subr.mxu0 0.0
        %284 = vmatpush1.xpose.msra.mxu0 0.0
        %285 = vmatprep.subr.mxu0 0.0
        %286 = vmatpush1.xpose.msra.mxu0 0.0
        %287 = vmatprep.subr.mxu0 0.0
        %288 = vmatpush1.xpose.msra.mxu0 0.0
        %289 = vmatprep.subr.mxu0 0.0
        %290 = vmatpush1.xpose.msra.mxu0 0.0
        %291 = vmatprep.subr.mxu0 0.0
        %292 = vmatpush1.xpose.msra.mxu0 0.0
        %293 = vmatprep.subr.mxu0 0.0
        %294 = vmatpush1.xpose.msra.mxu0 0.0
        %295 = vmatprep.subr.mxu0 0.0
        %296 = vmatpush1.xpose.msra.mxu0 0.0
        %297 = vmatprep.subr.mxu0 0.0
        %298 = vmatpush1.xpose.msra.mxu0 0.0
        %299 = vmatprep.mubr.f32.mxu0 0.0
        %v300 = vand.u32 %v229, 4294901760
        %v301 = vsub.f32 %v229, %v300
        %v302 = vand.u32 %v301, 4294901760
        %v303 = vsub.f32 %v301, %v302
        %v304 = vand.u32 %v303, 4294901760
        %305 = vmatmul.mubr.f32.gmra.mrb[0].mxu0 %v304
        %v306 = vpop.f32.mrb[0].mxu0
        %v307 = vadd.f32 %v226, %v306
        %v308 = vpop.f32.mrb[0].mxu0
        %309 = vdwg.mxu0
        %310 = vmatprep.subr.mxu0 0.0
        %v311 = vand.u32 %v232, 4294901760
        %v312 = vsub.f32 %v232, %v311
        %v313 = vand.u32 %v312, 4294901760
        %v314 = vsub.f32 %v312, %v313
        %v315 = vand.u32 %v314, 4294901760
        %316 = vmatpush1.xpose.msra.mxu0 %v315
        %317 = vmatprep.subr.mxu0 0.0
        %318 = vmatpush1.xpose.msra.mxu0 0.0
        %319 = vmatprep.subr.mxu0 0.0
        %320 = vmatpush1.xpose.msra.mxu0 0.0
        %321 = vmatprep.subr.mxu0 0.0
        %322 = vmatpush1.xpose.msra.mxu0 0.0
        %323 = vmatprep.subr.mxu0 0.0
        %324 = vmatpush1.xpose.msra.mxu0 0.0
        %325 = vmatprep.subr.mxu0 0.0
        %326 = vmatpush1.xpose.msra.mxu0 0.0
        %327 = vmatprep.subr.mxu0 0.0
        %328 = vmatpush1.xpose.msra.mxu0 0.0
        %329 = vmatprep.subr.mxu0 0.0
        %330 = vmatpush1.xpose.msra.mxu0 0.0
        %331 = vmatprep.subr.mxu0 0.0
        %332 = vmatpush1.xpose.msra.mxu0 0.0
        %333 = vmatprep.subr.mxu0 0.0
        %334 = vmatpush1.xpose.msra.mxu0 0.0
        %335 = vmatprep.subr.mxu0 0.0
        %336 = vmatpush1.xpose.msra.mxu0 0.0
        %337 = vmatprep.subr.mxu0 0.0
        %338 = vmatpush1.xpose.msra.mxu0 0.0
        %339 = vmatprep.subr.mxu0 0.0
        %340 = vmatpush1.xpose.msra.mxu0 0.0
        %341 = vmatprep.subr.mxu0 0.0
        %342 = vmatpush1.xpose.msra.mxu0 0.0
        %343 = vmatprep.subr.mxu0 0.0
        %344 = vmatpush1.xpose.msra.mxu0 0.0
        %345 = vmatprep.subr.mxu0 0.0
        %346 = vmatpush1.xpose.msra.mxu0 0.0
        %347 = vmatprep.subr.mxu0 0.0
        %348 = vmatpush1.xpose.msra.mxu0 0.0
        %349 = vmatprep.subr.mxu0 0.0
        %350 = vmatpush1.xpose.msra.mxu0 0.0
        %351 = vmatprep.subr.mxu0 0.0
        %352 = vmatpush1.xpose.msra.mxu0 0.0
        %353 = vmatprep.subr.mxu0 0.0
        %354 = vmatpush1.xpose.msra.mxu0 0.0
        %355 = vmatprep.subr.mxu0 0.0
        %356 = vmatpush1.xpose.msra.mxu0 0.0
        %357 = vmatprep.subr.mxu0 0.0
        %358 = vmatpush1.xpose.msra.mxu0 0.0
        %359 = vmatprep.subr.mxu0 0.0
        %360 = vmatpush1.xpose.msra.mxu0 0.0
        %361 = vmatprep.subr.mxu0 0.0
        %362 = vmatpush1.xpose.msra.mxu0 0.0
        %363 = vmatprep.subr.mxu0 0.0
        %364 = vmatpush1.xpose.msra.mxu0 0.0
        %365 = vmatprep.subr.mxu0 0.0
        %366 = vmatpush1.xpose.msra.mxu0 0.0
        %367 = vmatprep.subr.mxu0 0.0
        %368 = vmatpush1.xpose.msra.mxu0 0.0
        %369 = vmatprep.subr.mxu0 0.0
        %370 = vmatpush1.xpose.msra.mxu0 0.0
        %371 = vmatprep.subr.mxu0 0.0
        %372 = vmatpush1.xpose.msra.mxu0 0.0
        %373 = vmatprep.subr.mxu0 0.0
        %374 = vmatpush1.xpose.msra.mxu0 0.0
        %375 = vmatprep.subr.mxu0 0.0
        %376 = vmatpush1.xpose.msra.mxu0 0.0
        %377 = vmatprep.subr.mxu0 0.0
        %378 = vmatpush1.xpose.msra.mxu0 0.0
        %379 = vmatprep.mubr.f32.mxu0 0.0
        %v380 = vand.u32 %v229, 4294901760
        %381 = vmatmul.mubr.f32.gmra.mrb[0].mxu0 %v380
        %v382 = vpop.f32.mrb[0].mxu0
        %v383 = vadd.f32 %v307, %v382
        %v384 = vpop.f32.mrb[0].mxu0
        %385 = vdwg.mxu0
        %386 = vmatprep.subr.mxu0 0.0
        %v387 = vand.u32 %v232, 4294901760
        %v388 = vsub.f32 %v232, %v387
        %389 = vmatpush1.xpose.msra.mxu0 %v388
        %390 = vmatprep.subr.mxu0 0.0
        %391 = vmatpush1.xpose.msra.mxu0 0.0
        %392 = vmatprep.subr.mxu0 0.0
        %393 = vmatpush1.xpose.msra.mxu0 0.0
        %394 = vmatprep.subr.mxu0 0.0
        %395 = vmatpush1.xpose.msra.mxu0 0.0
        %396 = vmatprep.subr.mxu0 0.0
        %397 = vmatpush1.xpose.msra.mxu0 0.0
        %398 = vmatprep.subr.mxu0 0.0
        %399 = vmatpush1.xpose.msra.mxu0 0.0
        %400 = vmatprep.subr.mxu0 0.0
        %401 = vmatpush1.xpose.msra.mxu0 0.0
        %402 = vmatprep.subr.mxu0 0.0
        %403 = vmatpush1.xpose.msra.mxu0 0.0
        %404 = vmatprep.subr.mxu0 0.0
        %405 = vmatpush1.xpose.msra.mxu0 0.0
        %406 = vmatprep.subr.mxu0 0.0
        %407 = vmatpush1.xpose.msra.mxu0 0.0
        %408 = vmatprep.subr.mxu0 0.0
        %409 = vmatpush1.xpose.msra.mxu0 0.0
        %410 = vmatprep.subr.mxu0 0.0
        %411 = vmatpush1.xpose.msra.mxu0 0.0
        %412 = vmatprep.subr.mxu0 0.0
        %413 = vmatpush1.xpose.msra.mxu0 0.0
        %414 = vmatprep.subr.mxu0 0.0
        %415 = vmatpush1.xpose.msra.mxu0 0.0
        %416 = vmatprep.subr.mxu0 0.0
        %417 = vmatpush1.xpose.msra.mxu0 0.0
        %418 = vmatprep.subr.mxu0 0.0
        %419 = vmatpush1.xpose.msra.mxu0 0.0
        %420 = vmatprep.subr.mxu0 0.0
        %421 = vmatpush1.xpose.msra.mxu0 0.0
        %422 = vmatprep.subr.mxu0 0.0
        %423 = vmatpush1.xpose.msra.mxu0 0.0
        %424 = vmatprep.subr.mxu0 0.0
        %425 = vmatpush1.xpose.msra.mxu0 0.0
        %426 = vmatprep.subr.mxu0 0.0
        %427 = vmatpush1.xpose.msra.mxu0 0.0
        %428 = vmatprep.subr.mxu0 0.0
        %429 = vmatpush1.xpose.msra.mxu0 0.0
        %430 = vmatprep.subr.mxu0 0.0
        %431 = vmatpush1.xpose.msra.mxu0 0.0
        %432 = vmatprep.subr.mxu0 0.0
        %433 = vmatpush1.xpose.msra.mxu0 0.0
        %434 = vmatprep.subr.mxu0 0.0
        %435 = vmatpush1.xpose.msra.mxu0 0.0
        %436 = vmatprep.subr.mxu0 0.0
        %437 = vmatpush1.xpose.msra.mxu0 0.0
        %438 = vmatprep.subr.mxu0 0.0
        %439 = vmatpush1.xpose.msra.mxu0 0.0
        %440 = vmatprep.subr.mxu0 0.0
        %441 = vmatpush1.xpose.msra.mxu0 0.0
        %442 = vmatprep.subr.mxu0 0.0
        %443 = vmatpush1.xpose.msra.mxu0 0.0
        %444 = vmatprep.subr.mxu0 0.0
        %445 = vmatpush1.xpose.msra.mxu0 0.0
        %446 = vmatprep.subr.mxu0 0.0
        %447 = vmatpush1.xpose.msra.mxu0 0.0
        %448 = vmatprep.subr.mxu0 0.0
        %449 = vmatpush1.xpose.msra.mxu0 0.0
        %450 = vmatprep.subr.mxu0 0.0
        %451 = vmatpush1.xpose.msra.mxu0 0.0
        %452 = vmatprep.mubr.f32.mxu0 0.0
        %v453 = vand.u32 %v229, 4294901760
        %v454 = vsub.f32 %v229, %v453
        %455 = vmatmul.mubr.f32.gmra.mrb[0].mxu0 %v454
        %v456 = vpop.f32.mrb[0].mxu0
        %v457 = vadd.f32 %v383, %v456
        %v458 = vpop.f32.mrb[0].mxu0
        %459 = vdwg.mxu0
        %460 = vmatprep.subr.mxu0 0.0
        %v461 = vand.u32 %v232, 4294901760
        %462 = vmatpush1.xpose.msra.mxu0 %v461
        %463 = vmatprep.subr.mxu0 0.0
        %464 = vmatpush1.xpose.msra.mxu0 0.0
        %465 = vmatprep.subr.mxu0 0.0
        %466 = vmatpush1.xpose.msra.mxu0 0.0
        %467 = vmatprep.subr.mxu0 0.0
        %468 = vmatpush1.xpose.msra.mxu0 0.0
        %469 = vmatprep.subr.mxu0 0.0
        %470 = vmatpush1.xpose.msra.mxu0 0.0
        %471 = vmatprep.subr.mxu0 0.0
        %472 = vmatpush1.xpose.msra.mxu0 0.0
        %473 = vmatprep.subr.mxu0 0.0
        %474 = vmatpush1.xpose.msra.mxu0 0.0
        %475 = vmatprep.subr.mxu0 0.0
        %476 = vmatpush1.xpose.msra.mxu0 0.0
        %477 = vmatprep.subr.mxu0 0.0
        %478 = vmatpush1.xpose.msra.mxu0 0.0
        %479 = vmatprep.subr.mxu0 0.0
        %480 = vmatpush1.xpose.msra.mxu0 0.0
        %481 = vmatprep.subr.mxu0 0.0
        %482 = vmatpush1.xpose.msra.mxu0 0.0
        %483 = vmatprep.subr.mxu0 0.0
        %484 = vmatpush1.xpose.msra.mxu0 0.0
        %485 = vmatprep.subr.mxu0 0.0
        %486 = vmatpush1.xpose.msra.mxu0 0.0
        %487 = vmatprep.subr.mxu0 0.0
        %488 = vmatpush1.xpose.msra.mxu0 0.0
        %489 = vmatprep.subr.mxu0 0.0
        %490 = vmatpush1.xpose.msra.mxu0 0.0
        %491 = vmatprep.subr.mxu0 0.0
        %492 = vmatpush1.xpose.msra.mxu0 0.0
        %493 = vmatprep.subr.mxu0 0.0
        %494 = vmatpush1.xpose.msra.mxu0 0.0
        %495 = vmatprep.subr.mxu0 0.0
        %496 = vmatpush1.xpose.msra.mxu0 0.0
        %497 = vmatprep.subr.mxu0 0.0
        %498 = vmatpush1.xpose.msra.mxu0 0.0
        %499 = vmatprep.subr.mxu0 0.0
        %500 = vmatpush1.xpose.msra.mxu0 0.0
        %501 = vmatprep.subr.mxu0 0.0
        %502 = vmatpush1.xpose.msra.mxu0 0.0
        %503 = vmatprep.subr.mxu0 0.0
        %504 = vmatpush1.xpose.msra.mxu0 0.0
        %505 = vmatprep.subr.mxu0 0.0
        %506 = vmatpush1.xpose.msra.mxu0 0.0
        %507 = vmatprep.subr.mxu0 0.0
        %508 = vmatpush1.xpose.msra.mxu0 0.0
        %509 = vmatprep.subr.mxu0 0.0
        %510 = vmatpush1.xpose.msra.mxu0 0.0
        %511 = vmatprep.subr.mxu0 0.0
        %512 = vmatpush1.xpose.msra.mxu0 0.0
        %513 = vmatprep.subr.mxu0 0.0
        %514 = vmatpush1.xpose.msra.mxu0 0.0
        %515 = vmatprep.subr.mxu0 0.0
        %516 = vmatpush1.xpose.msra.mxu0 0.0
        %517 = vmatprep.subr.mxu0 0.0
        %518 = vmatpush1.xpose.msra.mxu0 0.0
        %519 = vmatprep.subr.mxu0 0.0
        %520 = vmatpush1.xpose.msra.mxu0 0.0
        %521 = vmatprep.subr.mxu0 0.0
        %522 = vmatpush1.xpose.msra.mxu0 0.0
        %523 = vmatprep.subr.mxu0 0.0
        %524 = vmatpush1.xpose.msra.mxu0 0.0
        %525 = vmatprep.mubr.f32.mxu0 0.0
        %v526 = vand.u32 %v229, 4294901760
        %v527 = vsub.f32 %v229, %v526
        %v528 = vand.u32 %v527, 4294901760
        %529 = vmatmul.mubr.f32.gmra.mrb[0].mxu0 %v528
        %v530 = vpop.f32.mrb[0].mxu0
        %v531 = vadd.f32 %v457, %v530
        %v532 = vpop.f32.mrb[0].mxu0
        %533 = vdwg.mxu0
        %534 = vmatprep.subr.mxu0 0.0
        %v535 = vand.u32 %v232, 4294901760
        %v536 = vsub.f32 %v232, %v535
        %v537 = vand.u32 %v536, 4294901760
        %538 = vmatpush1.xpose.msra.mxu0 %v537
        %539 = vmatprep.subr.mxu0 0.0
        %540 = vmatpush1.xpose.msra.mxu0 0.0
        %541 = vmatprep.subr.mxu0 0.0
        %542 = vmatpush1.xpose.msra.mxu0 0.0
        %543 = vmatprep.subr.mxu0 0.0
        %544 = vmatpush1.xpose.msra.mxu0 0.0
        %545 = vmatprep.subr.mxu0 0.0
        %546 = vmatpush1.xpose.msra.mxu0 0.0
        %547 = vmatprep.subr.mxu0 0.0
        %548 = vmatpush1.xpose.msra.mxu0 0.0
        %549 = vmatprep.subr.mxu0 0.0
        %550 = vmatpush1.xpose.msra.mxu0 0.0
        %551 = vmatprep.subr.mxu0 0.0
        %552 = vmatpush1.xpose.msra.mxu0 0.0
        %553 = vmatprep.subr.mxu0 0.0
        %554 = vmatpush1.xpose.msra.mxu0 0.0
        %555 = vmatprep.subr.mxu0 0.0
        %556 = vmatpush1.xpose.msra.mxu0 0.0
        %557 = vmatprep.subr.mxu0 0.0
        %558 = vmatpush1.xpose.msra.mxu0 0.0
        %559 = vmatprep.subr.mxu0 0.0
        %560 = vmatpush1.xpose.msra.mxu0 0.0
        %561 = vmatprep.subr.mxu0 0.0
        %562 = vmatpush1.xpose.msra.mxu0 0.0
        %563 = vmatprep.subr.mxu0 0.0
        %564 = vmatpush1.xpose.msra.mxu0 0.0
        %565 = vmatprep.subr.mxu0 0.0
        %566 = vmatpush1.xpose.msra.mxu0 0.0
        %567 = vmatprep.subr.mxu0 0.0
        %568 = vmatpush1.xpose.msra.mxu0 0.0
        %569 = vmatprep.subr.mxu0 0.0
        %570 = vmatpush1.xpose.msra.mxu0 0.0
        %571 = vmatprep.subr.mxu0 0.0
        %572 = vmatpush1.xpose.msra.mxu0 0.0
        %573 = vmatprep.subr.mxu0 0.0
        %574 = vmatpush1.xpose.msra.mxu0 0.0
        %575 = vmatprep.subr.mxu0 0.0
        %576 = vmatpush1.xpose.msra.mxu0 0.0
        %577 = vmatprep.subr.mxu0 0.0
        %578 = vmatpush1.xpose.msra.mxu0 0.0
        %579 = vmatprep.subr.mxu0 0.0
        %580 = vmatpush1.xpose.msra.mxu0 0.0
        %581 = vmatprep.subr.mxu0 0.0
        %582 = vmatpush1.xpose.msra.mxu0 0.0
        %583 = vmatprep.subr.mxu0 0.0
        %584 = vmatpush1.xpose.msra.mxu0 0.0
        %585 = vmatprep.subr.mxu0 0.0
        %586 = vmatpush1.xpose.msra.mxu0 0.0
        %587 = vmatprep.subr.mxu0 0.0
        %588 = vmatpush1.xpose.msra.mxu0 0.0
        %589 = vmatprep.subr.mxu0 0.0
        %590 = vmatpush1.xpose.msra.mxu0 0.0
        %591 = vmatprep.subr.mxu0 0.0
        %592 = vmatpush1.xpose.msra.mxu0 0.0
        %593 = vmatprep.subr.mxu0 0.0
        %594 = vmatpush1.xpose.msra.mxu0 0.0
        %595 = vmatprep.subr.mxu0 0.0
        %596 = vmatpush1.xpose.msra.mxu0 0.0
        %597 = vmatprep.subr.mxu0 0.0
        %598 = vmatpush1.xpose.msra.mxu0 0.0
        %599 = vmatprep.subr.mxu0 0.0
        %600 = vmatpush1.xpose.msra.mxu0 0.0
        %601 = vmatprep.mubr.f32.mxu0 0.0
        %v602 = vand.u32 %v229, 4294901760
        %603 = vmatmul.mubr.f32.gmra.mrb[0].mxu0 %v602
        %v604 = vpop.f32.mrb[0].mxu0
        %v605 = vadd.f32 %v531, %v604
        %v606 = vpop.f32.mrb[0].mxu0
        %607 = vdwg.mxu0
        %608 = vmatprep.subr.mxu0 0.0
        %v609 = vand.u32 %v232, 4294901760
        %610 = vmatpush1.xpose.msra.mxu0 %v609
        %611 = vmatprep.subr.mxu0 0.0
        %612 = vmatpush1.xpose.msra.mxu0 0.0
        %613 = vmatprep.subr.mxu0 0.0
        %614 = vmatpush1.xpose.msra.mxu0 0.0
        %615 = vmatprep.subr.mxu0 0.0
        %616 = vmatpush1.xpose.msra.mxu0 0.0
        %617 = vmatprep.subr.mxu0 0.0
        %618 = vmatpush1.xpose.msra.mxu0 0.0
        %619 = vmatprep.subr.mxu0 0.0
        %620 = vmatpush1.xpose.msra.mxu0 0.0
        %621 = vmatprep.subr.mxu0 0.0
        %622 = vmatpush1.xpose.msra.mxu0 0.0
        %623 = vmatprep.subr.mxu0 0.0
        %624 = vmatpush1.xpose.msra.mxu0 0.0
        %625 = vmatprep.subr.mxu0 0.0
        %626 = vmatpush1.xpose.msra.mxu0 0.0
        %627 = vmatprep.subr.mxu0 0.0
        %628 = vmatpush1.xpose.msra.mxu0 0.0
        %629 = vmatprep.subr.mxu0 0.0
        %630 = vmatpush1.xpose.msra.mxu0 0.0
        %631 = vmatprep.subr.mxu0 0.0
        %632 = vmatpush1.xpose.msra.mxu0 0.0
        %633 = vmatprep.subr.mxu0 0.0
        %634 = vmatpush1.xpose.msra.mxu0 0.0
        %635 = vmatprep.subr.mxu0 0.0
        %636 = vmatpush1.xpose.msra.mxu0 0.0
        %637 = vmatprep.subr.mxu0 0.0
        %638 = vmatpush1.xpose.msra.mxu0 0.0
        %639 = vmatprep.subr.mxu0 0.0
        %640 = vmatpush1.xpose.msra.mxu0 0.0
        %641 = vmatprep.subr.mxu0 0.0
        %642 = vmatpush1.xpose.msra.mxu0 0.0
        %643 = vmatprep.subr.mxu0 0.0
        %644 = vmatpush1.xpose.msra.mxu0 0.0
        %645 = vmatprep.subr.mxu0 0.0
        %646 = vmatpush1.xpose.msra.mxu0 0.0
        %647 = vmatprep.subr.mxu0 0.0
        %648 = vmatpush1.xpose.msra.mxu0 0.0
        %649 = vmatprep.subr.mxu0 0.0
        %650 = vmatpush1.xpose.msra.mxu0 0.0
        %651 = vmatprep.subr.mxu0 0.0
        %652 = vmatpush1.xpose.msra.mxu0 0.0
        %653 = vmatprep.subr.mxu0 0.0
        %654 = vmatpush1.xpose.msra.mxu0 0.0
        %655 = vmatprep.subr.mxu0 0.0
        %656 = vmatpush1.xpose.msra.mxu0 0.0
        %657 = vmatprep.subr.mxu0 0.0
        %658 = vmatpush1.xpose.msra.mxu0 0.0
        %659 = vmatprep.subr.mxu0 0.0
        %660 = vmatpush1.xpose.msra.mxu0 0.0
        %661 = vmatprep.subr.mxu0 0.0
        %662 = vmatpush1.xpose.msra.mxu0 0.0
        %663 = vmatprep.subr.mxu0 0.0
        %664 = vmatpush1.xpose.msra.mxu0 0.0
        %665 = vmatprep.subr.mxu0 0.0
        %666 = vmatpush1.xpose.msra.mxu0 0.0
        %667 = vmatprep.subr.mxu0 0.0
        %668 = vmatpush1.xpose.msra.mxu0 0.0
        %669 = vmatprep.subr.mxu0 0.0
        %670 = vmatpush1.xpose.msra.mxu0 0.0
        %671 = vmatprep.subr.mxu0 0.0
        %672 = vmatpush1.xpose.msra.mxu0 0.0
        %673 = vmatprep.mubr.f32.mxu0 0.0
        %v674 = vand.u32 %v229, 4294901760
        %675 = vmatmul.mubr.f32.gmra.mrb[0].mxu0 %v674
        %v676 = vpop.f32.mrb[0].mxu0
        %v677 = vadd.f32 %v605, %v676
        %v678 = vpop.f32.mrb[0].mxu0
        %679 = vdwg.mxu0
        %vm680 = vcmask 57344
        %v681 = vsel %vm680, %v677, -inf
        %682 = vmax.xlane.f32.xlu0 %v681
        %v683 = vpop.xlane.xlu0 %682
        %v684 = vsub.f32 %v677, %v683
        %v685 = vmul.f32 %v684, 1.442695
        %v686 = vpow.pop %v685
        %v687 = vsel %vm680, %v686, 0.0
        %688 = vadd.xlane.f32.xlu0 %v687
        %v689 = vpop.xlane.xlu0 %688
        %v690 = vrcp.pop %v689
        %v691 = vmul.f32 %v686, %v690
        %692 = vst.msk [vmem:[%s216] sm:$0x1] %vm680, %v691
        %vm693 = vcmask 64512
        %v695 = vsel %vm693, %v691, 0
        %697 = vmatprep.subr.mxu0 0.0
        %v698 = vand.u32 %v223, 4294901760
        %699 = vmatpush1.msra.mxu0 %v698
        %700 = vmatprep.subr.mxu0 0.0
        %701 = vmatpush1.msra.mxu0 0.0
        %702 = vmatprep.subr.mxu0 0.0
        %703 = vmatpush1.msra.mxu0 0.0
        %704 = vmatprep.subr.mxu0 0.0
        %705 = vmatpush1.msra.mxu0 0.0
        %706 = vmatprep.subr.mxu0 0.0
        %707 = vmatpush1.msra.mxu0 0.0
        %708 = vmatprep.subr.mxu0 0.0
        %709 = vmatpush1.msra.mxu0 0.0
        %710 = vmatprep.subr.mxu0 0.0
        %711 = vmatpush1.msra.mxu0 0.0
        %712 = vmatprep.subr.mxu0 0.0
        %713 = vmatpush1.msra.mxu0 0.0
        %714 = vmatprep.subr.mxu0 0.0
        %715 = vmatpush1.msra.mxu0 0.0
        %716 = vmatprep.subr.mxu0 0.0
        %717 = vmatpush1.msra.mxu0 0.0
        %718 = vmatprep.subr.mxu0 0.0
        %719 = vmatpush1.msra.mxu0 0.0
        %720 = vmatprep.subr.mxu0 0.0
        %721 = vmatpush1.msra.mxu0 0.0
        %722 = vmatprep.subr.mxu0 0.0
        %723 = vmatpush1.msra.mxu0 0.0
        %724 = vmatprep.subr.mxu0 0.0
        %725 = vmatpush1.msra.mxu0 0.0
        %726 = vmatprep.subr.mxu0 0.0
        %727 = vmatpush1.msra.mxu0 0.0
        %728 = vmatprep.subr.mxu0 0.0
        %729 = vmatpush1.msra.mxu0 0.0
        %730 = vmatprep.subr.mxu0 0.0
        %731 = vmatpush1.msra.mxu0 0.0
        %732 = vmatprep.subr.mxu0 0.0
        %733 = vmatpush1.msra.mxu0 0.0
        %734 = vmatprep.subr.mxu0 0.0
        %735 = vmatpush1.msra.mxu0 0.0
        %736 = vmatprep.subr.mxu0 0.0
        %737 = vmatpush1.msra.mxu0 0.0
        %738 = vmatprep.subr.mxu0 0.0
        %739 = vmatpush1.msra.mxu0 0.0
        %740 = vmatprep.subr.mxu0 0.0
        %741 = vmatpush1.msra.mxu0 0.0
        %742 = vmatprep.subr.mxu0 0.0
        %743 = vmatpush1.msra.mxu0 0.0
        %744 = vmatprep.subr.mxu0 0.0
        %745 = vmatpush1.msra.mxu0 0.0
        %746 = vmatprep.subr.mxu0 0.0
        %747 = vmatpush1.msra.mxu0 0.0
        %748 = vmatprep.subr.mxu0 0.0
        %749 = vmatpush1.msra.mxu0 0.0
        %750 = vmatprep.subr.mxu0 0.0
        %751 = vmatpush1.msra.mxu0 0.0
        %752 = vmatprep.subr.mxu0 0.0
        %753 = vmatpush1.msra.mxu0 0.0
        %754 = vmatprep.subr.mxu0 0.0
        %755 = vmatpush1.msra.mxu0 0.0
        %756 = vmatprep.subr.mxu0 0.0
        %757 = vmatpush1.msra.mxu0 0.0
        %758 = vmatprep.subr.mxu0 0.0
        %759 = vmatpush1.msra.mxu0 0.0
        %760 = vmatprep.subr.mxu0 0.0
        %761 = vmatpush1.msra.mxu0 0.0
        %762 = vmatprep.mubr.f32.mxu0 0.0
        %v763 = vand.u32 %v695, 4294901760
        %v764 = vsub.f32 %v695, %v763
        %v765 = vand.u32 %v764, 4294901760
        %v766 = vsub.f32 %v764, %v765
        %v767 = vand.u32 %v766, 4294901760
        %768 = vmatmul.mubr.f32.gmra.mrb[0].mxu0 %v767
        %v769 = vpop.f32.mrb[0].mxu0
        %v770 = vadd.f32 0.0, %v769
        %v771 = vpop.f32.mrb[0].mxu0
        %772 = vdwg.mxu0
        %773 = vmatprep.subr.mxu0 0.0
        %v774 = vand.u32 %v223, 4294901760
        %v775 = vsub.f32 %v223, %v774
        %v776 = vand.u32 %v775, 4294901760
        %v777 = vsub.f32 %v775, %v776
        %v778 = vand.u32 %v777, 4294901760
        %779 = vmatpush1.msra.mxu0 %v778
        %780 = vmatprep.subr.mxu0 0.0
        %781 = vmatpush1.msra.mxu0 0.0
        %782 = vmatprep.subr.mxu0 0.0
        %783 = vmatpush1.msra.mxu0 0.0
        %784 = vmatprep.subr.mxu0 0.0
        %785 = vmatpush1.msra.mxu0 0.0
        %786 = vmatprep.subr.mxu0 0.0
        %787 = vmatpush1.msra.mxu0 0.0
        %788 = vmatprep.subr.mxu0 0.0
        %789 = vmatpush1.msra.mxu0 0.0
        %790 = vmatprep.subr.mxu0 0.0
        %791 = vmatpush1.msra.mxu0 0.0
        %792 = vmatprep.subr.mxu0 0.0
        %793 = vmatpush1.msra.mxu0 0.0
        %794 = vmatprep.subr.mxu0 0.0
        %795 = vmatpush1.msra.mxu0 0.0
        %796 = vmatprep.subr.mxu0 0.0
        %797 = vmatpush1.msra.mxu0 0.0
        %798 = vmatprep.subr.mxu0 0.0
        %799 = vmatpush1.msra.mxu0 0.0
        %800 = vmatprep.subr.mxu0 0.0
        %801 = vmatpush1.msra.mxu0 0.0
        %802 = vmatprep.subr.mxu0 0.0
        %803 = vmatpush1.msra.mxu0 0.0
        %804 = vmatprep.subr.mxu0 0.0
        %805 = vmatpush1.msra.mxu0 0.0
        %806 = vmatprep.subr.mxu0 0.0
        %807 = vmatpush1.msra.mxu0 0.0
        %808 = vmatprep.subr.mxu0 0.0
        %809 = vmatpush1.msra.mxu0 0.0
        %810 = vmatprep.subr.mxu0 0.0
        %811 = vmatpush1.msra.mxu0 0.0
        %812 = vmatprep.subr.mxu0 0.0
        %813 = vmatpush1.msra.mxu0 0.0
        %814 = vmatprep.subr.mxu0 0.0
        %815 = vmatpush1.msra.mxu0 0.0
        %816 = vmatprep.subr.mxu0 0.0
        %817 = vmatpush1.msra.mxu0 0.0
        %818 = vmatprep.subr.mxu0 0.0
        %819 = vmatpush1.msra.mxu0 0.0
        %820 = vmatprep.subr.mxu0 0.0
        %821 = vmatpush1.msra.mxu0 0.0
        %822 = vmatprep.subr.mxu0 0.0
        %823 = vmatpush1.msra.mxu0 0.0
        %824 = vmatprep.subr.mxu0 0.0
        %825 = vmatpush1.msra.mxu0 0.0
        %826 = vmatprep.subr.mxu0 0.0
        %827 = vmatpush1.msra.mxu0 0.0
        %828 = vmatprep.subr.mxu0 0.0
        %829 = vmatpush1.msra.mxu0 0.0
        %830 = vmatprep.subr.mxu0 0.0
        %831 = vmatpush1.msra.mxu0 0.0
        %832 = vmatprep.subr.mxu0 0.0
        %833 = vmatpush1.msra.mxu0 0.0
        %834 = vmatprep.subr.mxu0 0.0
        %835 = vmatpush1.msra.mxu0 0.0
        %836 = vmatprep.subr.mxu0 0.0
        %837 = vmatpush1.msra.mxu0 0.0
        %838 = vmatprep.subr.mxu0 0.0
        %839 = vmatpush1.msra.mxu0 0.0
        %840 = vmatprep.subr.mxu0 0.0
        %841 = vmatpush1.msra.mxu0 0.0
        %842 = vmatprep.mubr.f32.mxu0 0.0
        %v843 = vand.u32 %v695, 4294901760
        %844 = vmatmul.mubr.f32.gmra.mrb[0].mxu0 %v843
        %v845 = vpop.f32.mrb[0].mxu0
        %v846 = vadd.f32 %v770, %v845
        %v847 = vpop.f32.mrb[0].mxu0
        %848 = vdwg.mxu0
        %849 = vmatprep.subr.mxu0 0.0
        %v850 = vand.u32 %v223, 4294901760
        %v851 = vsub.f32 %v223, %v850
        %852 = vmatpush1.msra.mxu0 %v851
        %853 = vmatprep.subr.mxu0 0.0
        %854 = vmatpush1.msra.mxu0 0.0
        %855 = vmatprep.subr.mxu0 0.0
        %856 = vmatpush1.msra.mxu0 0.0
        %857 = vmatprep.subr.mxu0 0.0
        %858 = vmatpush1.msra.mxu0 0.0
        %859 = vmatprep.subr.mxu0 0.0
        %860 = vmatpush1.msra.mxu0 0.0
        %861 = vmatprep.subr.mxu0 0.0
        %862 = vmatpush1.msra.mxu0 0.0
        %863 = vmatprep.subr.mxu0 0.0
        %864 = vmatpush1.msra.mxu0 0.0
        %865 = vmatprep.subr.mxu0 0.0
        %866 = vmatpush1.msra.mxu0 0.0
        %867 = vmatprep.subr.mxu0 0.0
        %868 = vmatpush1.msra.mxu0 0.0
        %869 = vmatprep.subr.mxu0 0.0
        %870 = vmatpush1.msra.mxu0 0.0
        %871 = vmatprep.subr.mxu0 0.0
        %872 = vmatpush1.msra.mxu0 0.0
        %873 = vmatprep.subr.mxu0 0.0
        %874 = vmatpush1.msra.mxu0 0.0
        %875 = vmatprep.subr.mxu0 0.0
        %876 = vmatpush1.msra.mxu0 0.0
        %877 = vmatprep.subr.mxu0 0.0
        %878 = vmatpush1.msra.mxu0 0.0
        %879 = vmatprep.subr.mxu0 0.0
        %880 = vmatpush1.msra.mxu0 0.0
        %881 = vmatprep.subr.mxu0 0.0
        %882 = vmatpush1.msra.mxu0 0.0
        %883 = vmatprep.subr.mxu0 0.0
        %884 = vmatpush1.msra.mxu0 0.0
        %885 = vmatprep.subr.mxu0 0.0
        %886 = vmatpush1.msra.mxu0 0.0
        %887 = vmatprep.subr.mxu0 0.0
        %888 = vmatpush1.msra.mxu0 0.0
        %889 = vmatprep.subr.mxu0 0.0
        %890 = vmatpush1.msra.mxu0 0.0
        %891 = vmatprep.subr.mxu0 0.0
        %892 = vmatpush1.msra.mxu0 0.0
        %893 = vmatprep.subr.mxu0 0.0
        %894 = vmatpush1.msra.mxu0 0.0
        %895 = vmatprep.subr.mxu0 0.0
        %896 = vmatpush1.msra.mxu0 0.0
        %897 = vmatprep.subr.mxu0 0.0
        %898 = vmatpush1.msra.mxu0 0.0
        %899 = vmatprep.subr.mxu0 0.0
        %900 = vmatpush1.msra.mxu0 0.0
        %901 = vmatprep.subr.mxu0 0.0
        %902 = vmatpush1.msra.mxu0 0.0
        %903 = vmatprep.subr.mxu0 0.0
        %904 = vmatpush1.msra.mxu0 0.0
        %905 = vmatprep.subr.mxu0 0.0
        %906 = vmatpush1.msra.mxu0 0.0
        %907 = vmatprep.subr.mxu0 0.0
        %908 = vmatpush1.msra.mxu0 0.0
        %909 = vmatprep.subr.mxu0 0.0
        %910 = vmatpush1.msra.mxu0 0.0
        %911 = vmatprep.subr.mxu0 0.0
        %912 = vmatpush1.msra.mxu0 0.0
        %913 = vmatprep.subr.mxu0 0.0
        %914 = vmatpush1.msra.mxu0 0.0
        %915 = vmatprep.mubr.f32.mxu0 0.0
        %v916 = vand.u32 %v695, 4294901760
        %v917 = vsub.f32 %v695, %v916
        %918 = vmatmul.mubr.f32.gmra.mrb[0].mxu0 %v917
        %v919 = vpop.f32.mrb[0].mxu0
        %v920 = vadd.f32 %v846, %v919
        %v921 = vpop.f32.mrb[0].mxu0
        %922 = vdwg.mxu0
        %923 = vmatprep.subr.mxu0 0.0
        %v924 = vand.u32 %v223, 4294901760
        %925 = vmatpush1.msra.mxu0 %v924
        %926 = vmatprep.subr.mxu0 0.0
        %927 = vmatpush1.msra.mxu0 0.0
        %928 = vmatprep.subr.mxu0 0.0
        %929 = vmatpush1.msra.mxu0 0.0
        %930 = vmatprep.subr.mxu0 0.0
        %931 = vmatpush1.msra.mxu0 0.0
        %932 = vmatprep.subr.mxu0 0.0
        %933 = vmatpush1.msra.mxu0 0.0
        %934 = vmatprep.subr.mxu0 0.0
        %935 = vmatpush1.msra.mxu0 0.0
        %936 = vmatprep.subr.mxu0 0.0
        %937 = vmatpush1.msra.mxu0 0.0
        %938 = vmatprep.subr.mxu0 0.0
        %939 = vmatpush1.msra.mxu0 0.0
        %940 = vmatprep.subr.mxu0 0.0
        %941 = vmatpush1.msra.mxu0 0.0
        %942 = vmatprep.subr.mxu0 0.0
        %943 = vmatpush1.msra.mxu0 0.0
        %944 = vmatprep.subr.mxu0 0.0
        %945 = vmatpush1.msra.mxu0 0.0
        %946 = vmatprep.subr.mxu0 0.0
        %947 = vmatpush1.msra.mxu0 0.0
        %948 = vmatprep.subr.mxu0 0.0
        %949 = vmatpush1.msra.mxu0 0.0
        %950 = vmatprep.subr.mxu0 0.0
        %951 = vmatpush1.msra.mxu0 0.0
        %952 = vmatprep.subr.mxu0 0.0
        %953 = vmatpush1.msra.mxu0 0.0
        %954 = vmatprep.subr.mxu0 0.0
        %955 = vmatpush1.msra.mxu0 0.0
        %956 = vmatprep.subr.mxu0 0.0
        %957 = vmatpush1.msra.mxu0 0.0
        %958 = vmatprep.subr.mxu0 0.0
        %959 = vmatpush1.msra.mxu0 0.0
        %960 = vmatprep.subr.mxu0 0.0
        %961 = vmatpush1.msra.mxu0 0.0
        %962 = vmatprep.subr.mxu0 0.0
        %963 = vmatpush1.msra.mxu0 0.0
        %964 = vmatprep.subr.mxu0 0.0
        %965 = vmatpush1.msra.mxu0 0.0
        %966 = vmatprep.subr.mxu0 0.0
        %967 = vmatpush1.msra.mxu0 0.0
        %968 = vmatprep.subr.mxu0 0.0
        %969 = vmatpush1.msra.mxu0 0.0
        %970 = vmatprep.subr.mxu0 0.0
        %971 = vmatpush1.msra.mxu0 0.0
        %972 = vmatprep.subr.mxu0 0.0
        %973 = vmatpush1.msra.mxu0 0.0
        %974 = vmatprep.subr.mxu0 0.0
        %975 = vmatpush1.msra.mxu0 0.0
        %976 = vmatprep.subr.mxu0 0.0
        %977 = vmatpush1.msra.mxu0 0.0
        %978 = vmatprep.subr.mxu0 0.0
        %979 = vmatpush1.msra.mxu0 0.0
        %980 = vmatprep.subr.mxu0 0.0
        %981 = vmatpush1.msra.mxu0 0.0
        %982 = vmatprep.subr.mxu0 0.0
        %983 = vmatpush1.msra.mxu0 0.0
        %984 = vmatprep.subr.mxu0 0.0
        %985 = vmatpush1.msra.mxu0 0.0
        %986 = vmatprep.subr.mxu0 0.0
        %987 = vmatpush1.msra.mxu0 0.0
        %988 = vmatprep.mubr.f32.mxu0 0.0
        %v989 = vand.u32 %v695, 4294901760
        %v990 = vsub.f32 %v695, %v989
        %v991 = vand.u32 %v990, 4294901760
        %992 = vmatmul.mubr.f32.gmra.mrb[0].mxu0 %v991
        %v993 = vpop.f32.mrb[0].mxu0
        %v994 = vadd.f32 %v920, %v993
        %v995 = vpop.f32.mrb[0].mxu0
        %996 = vdwg.mxu0
        %997 = vmatprep.subr.mxu0 0.0
        %v998 = vand.u32 %v223, 4294901760
        %v999 = vsub.f32 %v223, %v998
        %v1000 = vand.u32 %v999, 4294901760
        %1001 = vmatpush1.msra.mxu0 %v1000
        %1002 = vmatprep.subr.mxu0 0.0
        %1003 = vmatpush1.msra.mxu0 0.0
        %1004 = vmatprep.subr.mxu0 0.0
        %1005 = vmatpush1.msra.mxu0 0.0
        %1006 = vmatprep.subr.mxu0 0.0
        %1007 = vmatpush1.msra.mxu0 0.0
        %1008 = vmatprep.subr.mxu0 0.0
        %1009 = vmatpush1.msra.mxu0 0.0
        %1010 = vmatprep.subr.mxu0 0.0
        %1011 = vmatpush1.msra.mxu0 0.0
        %1012 = vmatprep.subr.mxu0 0.0
        %1013 = vmatpush1.msra.mxu0 0.0
        %1014 = vmatprep.subr.mxu0 0.0
        %1015 = vmatpush1.msra.mxu0 0.0
        %1016 = vmatprep.subr.mxu0 0.0
        %1017 = vmatpush1.msra.mxu0 0.0
        %1018 = vmatprep.subr.mxu0 0.0
        %1019 = vmatpush1.msra.mxu0 0.0
        %1020 = vmatprep.subr.mxu0 0.0
        %1021 = vmatpush1.msra.mxu0 0.0
        %1022 = vmatprep.subr.mxu0 0.0
        %1023 = vmatpush1.msra.mxu0 0.0
        %1024 = vmatprep.subr.mxu0 0.0
        %1025 = vmatpush1.msra.mxu0 0.0
        %1026 = vmatprep.subr.mxu0 0.0
        %1027 = vmatpush1.msra.mxu0 0.0
        %1028 = vmatprep.subr.mxu0 0.0
        %1029 = vmatpush1.msra.mxu0 0.0
        %1030 = vmatprep.subr.mxu0 0.0
        %1031 = vmatpush1.msra.mxu0 0.0
        %1032 = vmatprep.subr.mxu0 0.0
        %1033 = vmatpush1.msra.mxu0 0.0
        %1034 = vmatprep.subr.mxu0 0.0
        %1035 = vmatpush1.msra.mxu0 0.0
        %1036 = vmatprep.subr.mxu0 0.0
        %1037 = vmatpush1.msra.mxu0 0.0
        %1038 = vmatprep.subr.mxu0 0.0
        %1039 = vmatpush1.msra.mxu0 0.0
        %1040 = vmatprep.subr.mxu0 0.0
        %1041 = vmatpush1.msra.mxu0 0.0
        %1042 = vmatprep.subr.mxu0 0.0
        %1043 = vmatpush1.msra.mxu0 0.0
        %1044 = vmatprep.subr.mxu0 0.0
        %1045 = vmatpush1.msra.mxu0 0.0
        %1046 = vmatprep.subr.mxu0 0.0
        %1047 = vmatpush1.msra.mxu0 0.0
        %1048 = vmatprep.subr.mxu0 0.0
        %1049 = vmatpush1.msra.mxu0 0.0
        %1050 = vmatprep.subr.mxu0 0.0
        %1051 = vmatpush1.msra.mxu0 0.0
        %1052 = vmatprep.subr.mxu0 0.0
        %1053 = vmatpush1.msra.mxu0 0.0
        %1054 = vmatprep.subr.mxu0 0.0
        %1055 = vmatpush1.msra.mxu0 0.0
        %1056 = vmatprep.subr.mxu0 0.0
        %1057 = vmatpush1.msra.mxu0 0.0
        %1058 = vmatprep.subr.mxu0 0.0
        %1059 = vmatpush1.msra.mxu0 0.0
        %1060 = vmatprep.subr.mxu0 0.0
        %1061 = vmatpush1.msra.mxu0 0.0
        %1062 = vmatprep.subr.mxu0 0.0
        %1063 = vmatpush1.msra.mxu0 0.0
        %1064 = vmatprep.mubr.f32.mxu0 0.0
        %v1065 = vand.u32 %v695, 4294901760
        %1066 = vmatmul.mubr.f32.gmra.mrb[0].mxu0 %v1065
        %v1067 = vpop.f32.mrb[0].mxu0
        %v1068 = vadd.f32 %v994, %v1067
        %v1069 = vpop.f32.mrb[0].mxu0
        %1070 = vdwg.mxu0
        %1071 = vmatprep.subr.mxu0 0.0
        %v1072 = vand.u32 %v223, 4294901760
        %1073 = vmatpush1.msra.mxu0 %v1072
        %1074 = vmatprep.subr.mxu0 0.0
        %1075 = vmatpush1.msra.mxu0 0.0
        %1076 = vmatprep.subr.mxu0 0.0
        %1077 = vmatpush1.msra.mxu0 0.0
        %1078 = vmatprep.subr.mxu0 0.0
        %1079 = vmatpush1.msra.mxu0 0.0
        %1080 = vmatprep.subr.mxu0 0.0
        %1081 = vmatpush1.msra.mxu0 0.0
        %1082 = vmatprep.subr.mxu0 0.0
        %1083 = vmatpush1.msra.mxu0 0.0
        %1084 = vmatprep.subr.mxu0 0.0
        %1085 = vmatpush1.msra.mxu0 0.0
        %1086 = vmatprep.subr.mxu0 0.0
        %1087 = vmatpush1.msra.mxu0 0.0
        %1088 = vmatprep.subr.mxu0 0.0
        %1089 = vmatpush1.msra.mxu0 0.0
        %1090 = vmatprep.subr.mxu0 0.0
        %1091 = vmatpush1.msra.mxu0 0.0
        %1092 = vmatprep.subr.mxu0 0.0
        %1093 = vmatpush1.msra.mxu0 0.0
        %1094 = vmatprep.subr.mxu0 0.0
        %1095 = vmatpush1.msra.mxu0 0.0
        %1096 = vmatprep.subr.mxu0 0.0
        %1097 = vmatpush1.msra.mxu0 0.0
        %1098 = vmatprep.subr.mxu0 0.0
        %1099 = vmatpush1.msra.mxu0 0.0
        %1100 = vmatprep.subr.mxu0 0.0
        %1101 = vmatpush1.msra.mxu0 0.0
        %1102 = vmatprep.subr.mxu0 0.0
        %1103 = vmatpush1.msra.mxu0 0.0
        %1104 = vmatprep.subr.mxu0 0.0
        %1105 = vmatpush1.msra.mxu0 0.0
        %1106 = vmatprep.subr.mxu0 0.0
        %1107 = vmatpush1.msra.mxu0 0.0
        %1108 = vmatprep.subr.mxu0 0.0
        %1109 = vmatpush1.msra.mxu0 0.0
        %1110 = vmatprep.subr.mxu0 0.0
        %1111 = vmatpush1.msra.mxu0 0.0
        %1112 = vmatprep.subr.mxu0 0.0
        %1113 = vmatpush1.msra.mxu0 0.0
        %1114 = vmatprep.subr.mxu0 0.0
        %1115 = vmatpush1.msra.mxu0 0.0
        %1116 = vmatprep.subr.mxu0 0.0
        %1117 = vmatpush1.msra.mxu0 0.0
        %1118 = vmatprep.subr.mxu0 0.0
        %1119 = vmatpush1.msra.mxu0 0.0
        %1120 = vmatprep.subr.mxu0 0.0
        %1121 = vmatpush1.msra.mxu0 0.0
        %1122 = vmatprep.subr.mxu0 0.0
        %1123 = vmatpush1.msra.mxu0 0.0
        %1124 = vmatprep.subr.mxu0 0.0
        %1125 = vmatpush1.msra.mxu0 0.0
        %1126 = vmatprep.subr.mxu0 0.0
        %1127 = vmatpush1.msra.mxu0 0.0
        %1128 = vmatprep.subr.mxu0 0.0
        %1129 = vmatpush1.msra.mxu0 0.0
        %1130 = vmatprep.subr.mxu0 0.0
        %1131 = vmatpush1.msra.mxu0 0.0
        %1132 = vmatprep.subr.mxu0 0.0
        %1133 = vmatpush1.msra.mxu0 0.0
        %1134 = vmatprep.subr.mxu0 0.0
        %1135 = vmatpush1.msra.mxu0 0.0
        %1136 = vmatprep.mubr.f32.mxu0 0.0
        %v1137 = vand.u32 %v695, 4294901760
        %1138 = vmatmul.mubr.f32.gmra.mrb[0].mxu0 %v1137
        %v1139 = vpop.f32.mrb[0].mxu0
        %v1140 = vadd.f32 %v1068, %v1139
        %v1141 = vpop.f32.mrb[0].mxu0
        %1142 = vdwg.mxu0
        %vm1143 = vcmask 253952
        %1144 = vst.msk [vmem:[%s222] sm:$0x1] %vm1143, %v1140
        %s1145 = sand.u32 %s102, 1
        %s1146 = scalar_lea.sflag [#allocation5], %s1145
        %s1147 = sand.u32 %s102, 1
        %s1148 = scalar_lea.vmem [#allocation6], %s1147
        %s1149 = sand.u32 %s128, 1
        %s1150 = scalar_lea.sflag [#allocation8], %s1149
        %s1151 = sand.u32 %s128, 1
        %s1152 = scalar_lea.vmem [#allocation7], %s1151
        // Predicated region
        $region37: #{tpu_custom_call.1} parent=31 // pred_check
          %p1153 = pneg %p112
        $region38: #{tpu_custom_call.1} parent=31 // pred_check_branch
          %1155 = sbr.rel (%p1153) target = $region40
        $region39: #{tpu_custom_call.1} parent=31 // pred_region
          %s1157 = ssub.s32 16, 16
          %1158 = vsyncadd %s1146, %s1157
          %s1159 = smul.addr %s26, 16
          %s1160 = scalar_lea.hbm %s3, %s1159
          %s1162 = sshll.u32 %s1148, 4
          %s1163 = int_to_ptr.vmem [resolvable:$true] %s1162
          %1165 = dma.vmem_to_hbm [thread:$0]  %s1163, 16, %s1160, %s1146
        $region40: #{tpu_custom_call.1} parent=31 // pred_fallthru
          _
        // Predicated region
        $region41: #{tpu_custom_call.1} parent=31 // pred_check
          %p1166 = pneg %p138
        $region42: #{tpu_custom_call.1} parent=31 // pred_check_branch
          %1168 = sbr.rel (%p1166) target = $region44
        $region43: #{tpu_custom_call.1} parent=31 // pred_region
          %s1170 = ssub.s32 16, 16
          %1171 = vsyncadd %s1150, %s1170
          %s1172 = smul.addr %s26, 16
          %s1173 = scalar_lea.hbm %s4, %s1172
          %s1175 = sshll.u32 %s1152, 4
          %s1176 = int_to_ptr.vmem [resolvable:$true] %s1175
          %1178 = dma.vmem_to_hbm [thread:$0]  %s1176, 16, %s1173, %s1150
        $region44: #{tpu_custom_call.1} parent=31 // pred_fallthru
          _
      $region32: #{tpu_custom_call.1} parent=5 // pred_fallthru
        _
      %p1179 = scmp.le.s32.totalorder 2, %s21
      // Predicated region
      $region45: #{tpu_custom_call.1} parent=5 // pred_check
        %p1180 = pneg %p1179
      $region46: #{tpu_custom_call.1} parent=5 // pred_check_branch
        %1182 = sbr.rel (%p1180) target = $region48
      $region47: #{tpu_custom_call.1} parent=5 // pred_region
        %s1183 = ssub.s32 %s21, 2
        // Predicated region
        $region49: #{tpu_custom_call.1} parent=47 // pred_check
          %p1184 = pneg %p118
        $region50: #{tpu_custom_call.1} parent=47 // pred_check_branch
          %1186 = sbr.rel (%p1184) target = $region52
        $region51: #{tpu_custom_call.1} parent=47 // pred_region
          %s1187 = sand.u32 %s103, 1
          %s1188 = scalar_lea.sflag [#allocation5], %s1187
          %s1189 = sand.u32 %s103, 1
          %s1190 = scalar_lea.vmem [#allocation6], %s1189
          %1191 = dma.done %s1188, 16
        $region52: #{tpu_custom_call.1} parent=47 // pred_fallthru
          _
        // Predicated region
        $region53: #{tpu_custom_call.1} parent=47 // pred_check
          %p1192 = pneg %p144
        $region54: #{tpu_custom_call.1} parent=47 // pred_check_branch
          %1194 = sbr.rel (%p1192) target = $region56
        $region55: #{tpu_custom_call.1} parent=47 // pred_region
          %s1195 = sand.u32 %s129, 1
          %s1196 = scalar_lea.sflag [#allocation8], %s1195
          %s1197 = sand.u32 %s129, 1
          %s1198 = scalar_lea.vmem [#allocation7], %s1197
          %1199 = dma.done %s1196, 16
        $region56: #{tpu_custom_call.1} parent=47 // pred_fallthru
          _
      $region48: #{tpu_custom_call.1} parent=5 // pred_fallthru
        _
    $region6: #{tpu_custom_call.1} parent=1 // loop_footer
      %s25 = sadd.s32 1, %s21
    $region7: #{tpu_custom_call.1} parent=1 // loop_footer_branch
      %20 = sbr.rel target = $region3
    $region8: #{tpu_custom_call.1} parent=1 // loop_exit
      _
    %1200 = vsyncpa [#allocation4], 1
    %s1201 = scalar_lea.sflag [#allocation4], 1
    %1202 = vsyncpa %s1201, 1
    %1203 = vsyncpa [#allocation5], 1
    %s1204 = scalar_lea.sflag [#allocation5], 1
    %1205 = vsyncpa %s1204, 1
    %1206 = vsyncpa [#allocation8], 1
    %s1207 = scalar_lea.sflag [#allocation8], 1
    %1208 = vsyncpa %s1207, 1

</llo_original>
